<compile_context>
chip_gen: v7x
topology: tpu7x:2x2x1
jax: 0.10.0
libtpu: 0.0.40
codegen_flags: <defaults>
</compile_context>

<pallas_src>
import jax
import jax.numpy as jnp
from jax import lax
from jax.experimental import pallas as pl
from jax.experimental.pallas import tpu as pltpu


def fasternet_block(x_nchw, wp_oihw, w2_oihw, gamma, beta, mean, var, w3_oihw,
                    eps=1e-5):
    """FasterNetBlock forward. x_nchw: (N, C, H, W) float32 -> (N, C, H, W)."""
    N, C, H, W = x_nchw.shape
    Cp = wp_oihw.shape[0]          # partial-conv channels (C // n_div)
    Ci = w2_oihw.shape[0]          # inner channels
    HW = H * W

    # ---- weight / BN preparation (tiny, wrapper-side, exact) -----------------
    # PConv 3x3 weight -> (Cp, 9*Cp), tap-major / channel-minor, matching the
    # im2col row order built inside the kernel.
    wp_flat = jnp.transpose(wp_oihw, (0, 2, 3, 1)).reshape(Cp, 9 * Cp)
    wp_flat = wp_flat.astype(jnp.bfloat16)

    # Fold BN scale into the 1x1 conv2 weight (inference semantics); split into
    # PConv-channel part and passthrough part so the kernel needs no concat.
    bn_scale = gamma / jnp.sqrt(var + eps)                          # (Ci,)
    bn_bias = (beta - mean * bn_scale).reshape(Ci, 1).astype(jnp.float32)
    w2f = w2_oihw[:, :, 0, 0] * bn_scale[:, None]                   # (Ci, C)
    w2a = w2f[:, :Cp].astype(jnp.bfloat16)                          # (Ci, Cp)
    w2b = w2f[:, Cp:].astype(jnp.bfloat16)                          # (Ci, C-Cp)

    w3 = w3_oihw[:, :, 0, 0].astype(jnp.bfloat16)                   # (C, Ci)

    # Free (bitcast) reshape: NCHW -> (N, C, H*W).  No HBM transpose passes.
    x_flat = x_nchw.reshape(N, C, HW)

    def kernel(x_ref, wp_ref, w2a_ref, w2b_ref, bnb_ref, w3_ref, o_ref,
               im2col_ref):
        # x_ref: (1, C, HW) f32.  All activations are lane-dense (minor = HW).
        xc = x_ref[0]                                    # (C, HW) f32
        xp = xc[:Cp, :]                                  # PConv channels (f32)
        xrest_bf = xc[Cp:, :].astype(jnp.bfloat16)       # passthrough channels

        # --- PConv: 9 shifted taps via lane rolls + boundary masks ----------
        lane = lax.broadcasted_iota(jnp.int32, (1, HW), 1)
        if (W & (W - 1)) == 0:
            col = lane & (W - 1)                         # lane index mod W
        else:
            col = lane % W

        for ki in range(3):
            for kj in range(3):
                off = (ki - 1) * W + (kj - 1)            # flat read offset
                if off == 0:
                    t = xp
                else:
                    t = pltpu.roll(xp, shift=(-off) % HW, axis=1)
                mask = None
                if ki == 0:                              # reads row - 1
                    mask = lane >= W
                elif ki == 2:                            # reads row + 1
                    mask = lane < (H - 1) * W
                if kj == 0:                              # reads col - 1
                    cm = col != 0
                    mask = cm if mask is None else jnp.logical_and(mask, cm)
                elif kj == 2:                            # reads col + 1
                    cm = col != (W - 1)
                    mask = cm if mask is None else jnp.logical_and(mask, cm)
                if mask is not None:
                    t = jnp.where(mask, t, 0.0)
                idx = ki * 3 + kj
                # Lane-dense staging buffer; every row is written each step,
                # so no zero-fill of the scratch is needed.
                im2col_ref[idx * Cp:(idx + 1) * Cp, :] = t

        im2col = im2col_ref[...].astype(jnp.bfloat16)    # (9*Cp, HW)

        # Single im2col matmul for the 3x3 partial conv: (Cp,9Cp)@(9Cp,HW).
        acc = jnp.dot(wp_ref[...], im2col,
                      preferred_element_type=jnp.float32)            # (Cp, HW)

        # --- ConvBNLayer: split 1x1 matmul (no concat) + folded BN + ReLU ---
        z = jnp.dot(w2a_ref[...], acc.astype(jnp.bfloat16),
                    preferred_element_type=jnp.float32)
        z = z + jnp.dot(w2b_ref[...], xrest_bf,
                        preferred_element_type=jnp.float32)
        z = jnp.maximum(z + bnb_ref[...], 0.0)                        # (Ci, HW)

        # --- conv3 (1x1) + residual add (f32) --------------------------------
        y = jnp.dot(w3_ref[...], z.astype(jnp.bfloat16),
                    preferred_element_type=jnp.float32)               # (C, HW)
        o_ref[...] = (xc + y).reshape(1, C, HW).astype(o_ref.dtype)

    out_flat = pl.pallas_call(
        kernel,
        out_shape=jax.ShapeDtypeStruct((N, C, HW), x_nchw.dtype),
        grid_spec=pltpu.PrefetchScalarGridSpec(
            num_scalar_prefetch=0,
            grid=(N,),
            in_specs=[
                pl.BlockSpec((1, C, HW), lambda n: (n, 0, 0)),     # lane-dense
                pl.BlockSpec((Cp, 9 * Cp), lambda n: (0, 0)),      # constant idx
                pl.BlockSpec((Ci, Cp), lambda n: (0, 0)),
                pl.BlockSpec((Ci, C - Cp), lambda n: (0, 0)),
                pl.BlockSpec((Ci, 1), lambda n: (0, 0)),
                pl.BlockSpec((C, Ci), lambda n: (0, 0)),
            ],
            out_specs=pl.BlockSpec((1, C, HW), lambda n: (n, 0, 0)),
            scratch_shapes=[pltpu.VMEM((9 * Cp, HW), jnp.float32)],  # im2col
        ),
        compiler_params=pltpu.CompilerParams(
            dimension_semantics=("parallel",)),
    )(x_flat, wp_flat, w2a, w2b, bn_bias, w3)

    return out_flat.reshape(N, C, H, W)            # free reshape back to NCHW


def _reference(x, wp, w2, gamma, beta, mean, var, w3, eps=1e-5):
    # Pure-JAX f32 reference matching the PyTorch module (inference BN).
    Cp = wp.shape[0]
    dn = ("NCHW", "OIHW", "NCHW")
    y1 = lax.conv_general_dilated(x[:, :Cp], wp, (1, 1), "SAME",
                                  dimension_numbers=dn)
    y = jnp.concatenate([y1, x[:, Cp:]], axis=1)
    z = lax.conv_general_dilated(y, w2, (1, 1), "VALID", dimension_numbers=dn)
    z = (z - mean[None, :, None, None]) / jnp.sqrt(var[None, :, None, None] + eps)
    z = z * gamma[None, :, None, None] + beta[None, :, None, None]
    z = jnp.maximum(z, 0.0)
    o = lax.conv_general_dilated(z, w3, (1, 1), "VALID", dimension_numbers=dn)
    return x + o


if __name__ == "__main__":
    # Small shapes consistent with the module: N=2, C=8, H=W=16, n_div=4.
    N, C, H, W = 2, 8, 16, 16
    n_div = 4
    Cp = C // n_div                 # partial-conv channels
    Ci = C * 2                      # inner_channels = in_channels * 2

    key = jax.random.PRNGKey(0)
    k = jax.random.split(key, 8)
    x = jax.random.normal(k[0], (N, C, H, W), jnp.float32)
    wp = jax.random.normal(k[1], (Cp, Cp, 3, 3), jnp.float32) * 0.2   # PConv 3x3
    w2 = jax.random.normal(k[2], (Ci, C, 1, 1), jnp.float32) * 0.2    # 1x1 expand
    w3 = jax.random.normal(k[3], (C, Ci, 1, 1), jnp.float32) * 0.2    # 1x1 project
    gamma = jax.random.uniform(k[4], (Ci,), jnp.float32, 0.5, 1.5)
    beta = jax.random.normal(k[5], (Ci,), jnp.float32) * 0.1
    mean = jax.random.normal(k[6], (Ci,), jnp.float32) * 0.1
    var = jax.random.uniform(k[7], (Ci,), jnp.float32, 0.5, 1.5)

    block_fn = jax.jit(fasternet_block)
    out = block_fn(x, wp, w2, gamma, beta, mean, var, w3)
    out = jax.block_until_ready(out)

    ref = _reference(x, wp, w2, gamma, beta, mean, var, w3)
    assert out.shape == (N, C, H, W)
    # Tolerance accounts for bf16 MXU matmuls (f32 accumulation / residual).
    assert jnp.allclose(out, ref, rtol=2e-2, atol=5e-2), "mismatch vs reference"
    print("KERNEL_OK")
</pallas_src>

<mosaic_0001>
module attributes {stable_mosaic.version = 11 : i64} {
  func.func @kernel(%arg0: i32, %arg1: memref<1x8x256xf32, #tpu.memory_space<vmem>>, %arg2: memref<2x18xbf16, #tpu.memory_space<vmem>>, %arg3: memref<16x2xbf16, #tpu.memory_space<vmem>>, %arg4: memref<16x6xbf16, #tpu.memory_space<vmem>>, %arg5: memref<16x1xf32, #tpu.memory_space<vmem>>, %arg6: memref<8x16xbf16, #tpu.memory_space<vmem>>, %arg7: memref<1x8x256xf32, #tpu.memory_space<vmem>>, %arg8: memref<18x256xf32, #tpu.memory_space<vmem>>) attributes {dimension_semantics = [#tpu.dimension_semantics<parallel>], iteration_bounds = array<i64: 2>, scalar_prefetch = 0 : i64, scratch_operands = 1 : i64, tpu.core_type = #tpu.core_type<tc>, window_params = [{transform_indices = @transform_0, window_bounds = array<i64: 1, 8, 256>}, {pipeline_mode = #tpu.pipeline_mode<synchronous>, transform_indices = @transform_1, window_bounds = array<i64: 2, 18>}, {pipeline_mode = #tpu.pipeline_mode<synchronous>, transform_indices = @transform_2, window_bounds = array<i64: 16, 2>}, {pipeline_mode = #tpu.pipeline_mode<synchronous>, transform_indices = @transform_3, window_bounds = array<i64: 16, 6>}, {pipeline_mode = #tpu.pipeline_mode<synchronous>, transform_indices = @transform_4, window_bounds = array<i64: 16, 1>}, {pipeline_mode = #tpu.pipeline_mode<synchronous>, transform_indices = @transform_5, window_bounds = array<i64: 8, 16>}, {transform_indices = @transform_6, window_bounds = array<i64: 1, 8, 256>}]} {
    %c0 = arith.constant 0 : index
    %c0_0 = arith.constant 0 : index
    %c0_1 = arith.constant 0 : index
    %0 = vector.load %arg1[%c0, %c0_0, %c0_1] : memref<1x8x256xf32, #tpu.memory_space<vmem>>, vector<1x8x256xf32>
    %1 = vector.shape_cast %0 : vector<1x8x256xf32> to vector<8x256xf32>
    %2 = vector.extract_strided_slice %1 {offsets = [0, 0], sizes = [2, 256], strides = [1, 1]} : vector<8x256xf32> to vector<2x256xf32>
    %3 = vector.extract_strided_slice %1 {offsets = [2, 0], sizes = [6, 256], strides = [1, 1]} : vector<8x256xf32> to vector<6x256xf32>
    %4 = arith.truncf %3 : vector<6x256xf32> to vector<6x256xbf16>
    %5 = tpu.iota {dimensions = array<i32: 1>} : vector<1x256xi32>
    %c15_i32 = arith.constant 15 : i32
    %6 = vector.broadcast %c15_i32 : i32 to vector<1x256xi32>
    %7 = arith.andi %5, %6 : vector<1x256xi32>
    %c17_i32 = arith.constant 17 : i32
    %8 = tpu.dynamic_rotate %2 by %c17_i32 dim 1 : vector<2x256xf32>, i32 -> vector<2x256xf32>
    %c16_i32 = arith.constant 16 : i32
    %9 = vector.broadcast %c16_i32 : i32 to vector<1x256xi32>
    %10 = arith.cmpi sge, %5, %9 : vector<1x256xi32>
    %c0_i32 = arith.constant 0 : i32
    %11 = vector.broadcast %c0_i32 : i32 to vector<1x256xi32>
    %12 = arith.cmpi ne, %7, %11 : vector<1x256xi32>
    %13 = arith.andi %10, %12 : vector<1x256xi1>
    %cst = arith.constant 0.000000e+00 : f32
    %14 = vector.shape_cast %13 : vector<1x256xi1> to vector<1x256xi1>
    %15 = vector.broadcast %14 : vector<1x256xi1> to vector<2x256xi1>
    %16 = vector.broadcast %cst : f32 to vector<2x256xf32>
    %17 = arith.select %15, %8, %16 : vector<2x256xi1>, vector<2x256xf32>
    %c0_2 = arith.constant 0 : index
    %c0_3 = arith.constant 0 : index
    %18 = vector.load %arg8[%c0_2, %c0_3] : memref<18x256xf32, #tpu.memory_space<vmem>>, vector<2x256xf32>
    tpu.vector_store %arg8[%c0_2, %c0_3], %17 {strides = array<i32>} : memref<18x256xf32, #tpu.memory_space<vmem>>, vector<2x256xf32>,
    %c16_i32_4 = arith.constant 16 : i32
    %19 = tpu.dynamic_rotate %2 by %c16_i32_4 dim 1 : vector<2x256xf32>, i32 -> vector<2x256xf32>
    %c16_i32_5 = arith.constant 16 : i32
    %20 = vector.broadcast %c16_i32_5 : i32 to vector<1x256xi32>
    %21 = arith.cmpi sge, %5, %20 : vector<1x256xi32>
    %cst_6 = arith.constant 0.000000e+00 : f32
    %22 = vector.shape_cast %21 : vector<1x256xi1> to vector<1x256xi1>
    %23 = vector.broadcast %22 : vector<1x256xi1> to vector<2x256xi1>
    %24 = vector.broadcast %cst_6 : f32 to vector<2x256xf32>
    %25 = arith.select %23, %19, %24 : vector<2x256xi1>, vector<2x256xf32>
    %c2 = arith.constant 2 : index
    %c0_7 = arith.constant 0 : index
    %26 = vector.load %arg8[%c2, %c0_7] : memref<18x256xf32, #tpu.memory_space<vmem>>, vector<2x256xf32>
    tpu.vector_store %arg8[%c2, %c0_7], %25 {strides = array<i32>} : memref<18x256xf32, #tpu.memory_space<vmem>>, vector<2x256xf32>,
    %c15_i32_8 = arith.constant 15 : i32
    %27 = tpu.dynamic_rotate %2 by %c15_i32_8 dim 1 : vector<2x256xf32>, i32 -> vector<2x256xf32>
    %c16_i32_9 = arith.constant 16 : i32
    %28 = vector.broadcast %c16_i32_9 : i32 to vector<1x256xi32>
    %29 = arith.cmpi sge, %5, %28 : vector<1x256xi32>
    %c15_i32_10 = arith.constant 15 : i32
    %30 = vector.broadcast %c15_i32_10 : i32 to vector<1x256xi32>
    %31 = arith.cmpi ne, %7, %30 : vector<1x256xi32>
    %32 = arith.andi %29, %31 : vector<1x256xi1>
    %cst_11 = arith.constant 0.000000e+00 : f32
    %33 = vector.shape_cast %32 : vector<1x256xi1> to vector<1x256xi1>
    %34 = vector.broadcast %33 : vector<1x256xi1> to vector<2x256xi1>
    %35 = vector.broadcast %cst_11 : f32 to vector<2x256xf32>
    %36 = arith.select %34, %27, %35 : vector<2x256xi1>, vector<2x256xf32>
    %c4 = arith.constant 4 : index
    %c0_12 = arith.constant 0 : index
    %37 = vector.load %arg8[%c4, %c0_12] : memref<18x256xf32, #tpu.memory_space<vmem>>, vector<2x256xf32>
    tpu.vector_store %arg8[%c4, %c0_12], %36 {strides = array<i32>} : memref<18x256xf32, #tpu.memory_space<vmem>>, vector<2x256xf32>,
    %c1_i32 = arith.constant 1 : i32
    %38 = tpu.dynamic_rotate %2 by %c1_i32 dim 1 : vector<2x256xf32>, i32 -> vector<2x256xf32>
    %c0_i32_13 = arith.constant 0 : i32
    %39 = vector.broadcast %c0_i32_13 : i32 to vector<1x256xi32>
    %40 = arith.cmpi ne, %7, %39 : vector<1x256xi32>
    %cst_14 = arith.constant 0.000000e+00 : f32
    %41 = vector.shape_cast %40 : vector<1x256xi1> to vector<1x256xi1>
    %42 = vector.broadcast %41 : vector<1x256xi1> to vector<2x256xi1>
    %43 = vector.broadcast %cst_14 : f32 to vector<2x256xf32>
    %44 = arith.select %42, %38, %43 : vector<2x256xi1>, vector<2x256xf32>
    %c6 = arith.constant 6 : index
    %c0_15 = arith.constant 0 : index
    %45 = vector.load %arg8[%c6, %c0_15] : memref<18x256xf32, #tpu.memory_space<vmem>>, vector<2x256xf32>
    tpu.vector_store %arg8[%c6, %c0_15], %44 {strides = array<i32>} : memref<18x256xf32, #tpu.memory_space<vmem>>, vector<2x256xf32>,
    %c8 = arith.constant 8 : index
    %c0_16 = arith.constant 0 : index
    %46 = vector.load %arg8[%c8, %c0_16] : memref<18x256xf32, #tpu.memory_space<vmem>>, vector<2x256xf32>
    tpu.vector_store %arg8[%c8, %c0_16], %2 {strides = array<i32>} : memref<18x256xf32, #tpu.memory_space<vmem>>, vector<2x256xf32>,
    %c255_i32 = arith.constant 255 : i32
    %47 = tpu.dynamic_rotate %2 by %c255_i32 dim 1 : vector<2x256xf32>, i32 -> vector<2x256xf32>
    %c15_i32_17 = arith.constant 15 : i32
    %48 = vector.broadcast %c15_i32_17 : i32 to vector<1x256xi32>
    %49 = arith.cmpi ne, %7, %48 : vector<1x256xi32>
    %cst_18 = arith.constant 0.000000e+00 : f32
    %50 = vector.shape_cast %49 : vector<1x256xi1> to vector<1x256xi1>
    %51 = vector.broadcast %50 : vector<1x256xi1> to vector<2x256xi1>
    %52 = vector.broadcast %cst_18 : f32 to vector<2x256xf32>
    %53 = arith.select %51, %47, %52 : vector<2x256xi1>, vector<2x256xf32>
    %c10 = arith.constant 10 : index
    %c0_19 = arith.constant 0 : index
    %54 = vector.load %arg8[%c10, %c0_19] : memref<18x256xf32, #tpu.memory_space<vmem>>, vector<2x256xf32>
    tpu.vector_store %arg8[%c10, %c0_19], %53 {strides = array<i32>} : memref<18x256xf32, #tpu.memory_space<vmem>>, vector<2x256xf32>,
    %c241_i32 = arith.constant 241 : i32
    %55 = tpu.dynamic_rotate %2 by %c241_i32 dim 1 : vector<2x256xf32>, i32 -> vector<2x256xf32>
    %c240_i32 = arith.constant 240 : i32
    %56 = vector.broadcast %c240_i32 : i32 to vector<1x256xi32>
    %57 = arith.cmpi slt, %5, %56 : vector<1x256xi32>
    %c0_i32_20 = arith.constant 0 : i32
    %58 = vector.broadcast %c0_i32_20 : i32 to vector<1x256xi32>
    %59 = arith.cmpi ne, %7, %58 : vector<1x256xi32>
    %60 = arith.andi %57, %59 : vector<1x256xi1>
    %cst_21 = arith.constant 0.000000e+00 : f32
    %61 = vector.shape_cast %60 : vector<1x256xi1> to vector<1x256xi1>
    %62 = vector.broadcast %61 : vector<1x256xi1> to vector<2x256xi1>
    %63 = vector.broadcast %cst_21 : f32 to vector<2x256xf32>
    %64 = arith.select %62, %55, %63 : vector<2x256xi1>, vector<2x256xf32>
    %c12 = arith.constant 12 : index
    %c0_22 = arith.constant 0 : index
    %65 = vector.load %arg8[%c12, %c0_22] : memref<18x256xf32, #tpu.memory_space<vmem>>, vector<2x256xf32>
    tpu.vector_store %arg8[%c12, %c0_22], %64 {strides = array<i32>} : memref<18x256xf32, #tpu.memory_space<vmem>>, vector<2x256xf32>,
    %c240_i32_23 = arith.constant 240 : i32
    %66 = tpu.dynamic_rotate %2 by %c240_i32_23 dim 1 : vector<2x256xf32>, i32 -> vector<2x256xf32>
    %c240_i32_24 = arith.constant 240 : i32
    %67 = vector.broadcast %c240_i32_24 : i32 to vector<1x256xi32>
    %68 = arith.cmpi slt, %5, %67 : vector<1x256xi32>
    %cst_25 = arith.constant 0.000000e+00 : f32
    %69 = vector.shape_cast %68 : vector<1x256xi1> to vector<1x256xi1>
    %70 = vector.broadcast %69 : vector<1x256xi1> to vector<2x256xi1>
    %71 = vector.broadcast %cst_25 : f32 to vector<2x256xf32>
    %72 = arith.select %70, %66, %71 : vector<2x256xi1>, vector<2x256xf32>
    %c14 = arith.constant 14 : index
    %c0_26 = arith.constant 0 : index
    %73 = vector.load %arg8[%c14, %c0_26] : memref<18x256xf32, #tpu.memory_space<vmem>>, vector<2x256xf32>
    tpu.vector_store %arg8[%c14, %c0_26], %72 {strides = array<i32>} : memref<18x256xf32, #tpu.memory_space<vmem>>, vector<2x256xf32>,
    %c239_i32 = arith.constant 239 : i32
    %74 = tpu.dynamic_rotate %2 by %c239_i32 dim 1 : vector<2x256xf32>, i32 -> vector<2x256xf32>
    %c240_i32_27 = arith.constant 240 : i32
    %75 = vector.broadcast %c240_i32_27 : i32 to vector<1x256xi32>
    %76 = arith.cmpi slt, %5, %75 : vector<1x256xi32>
    %c15_i32_28 = arith.constant 15 : i32
    %77 = vector.broadcast %c15_i32_28 : i32 to vector<1x256xi32>
    %78 = arith.cmpi ne, %7, %77 : vector<1x256xi32>
    %79 = arith.andi %76, %78 : vector<1x256xi1>
    %cst_29 = arith.constant 0.000000e+00 : f32
    %80 = vector.shape_cast %79 : vector<1x256xi1> to vector<1x256xi1>
    %81 = vector.broadcast %80 : vector<1x256xi1> to vector<2x256xi1>
    %82 = vector.broadcast %cst_29 : f32 to vector<2x256xf32>
    %83 = arith.select %81, %74, %82 : vector<2x256xi1>, vector<2x256xf32>
    %c16 = arith.constant 16 : index
    %c0_30 = arith.constant 0 : index
    %84 = vector.load %arg8[%c16, %c0_30] : memref<18x256xf32, #tpu.memory_space<vmem>>, vector<2x256xf32>
    tpu.vector_store %arg8[%c16, %c0_30], %83 {strides = array<i32>} : memref<18x256xf32, #tpu.memory_space<vmem>>, vector<2x256xf32>,
    %c0_31 = arith.constant 0 : index
    %c0_32 = arith.constant 0 : index
    %85 = vector.load %arg8[%c0_31, %c0_32] : memref<18x256xf32, #tpu.memory_space<vmem>>, vector<18x256xf32>
    %86 = arith.truncf %85 : vector<18x256xf32> to vector<18x256xbf16>
    %c0_33 = arith.constant 0 : index
    %c0_34 = arith.constant 0 : index
    %87 = vector.load %arg2[%c0_33, %c0_34] : memref<2x18xbf16, #tpu.memory_space<vmem>>, vector<2x18xbf16>
    %cst_35 = arith.constant dense<0.000000e+00> : vector<2x256xf32>
    %88 = tpu.matmul %87, %86, %cst_35 {dimension_numbers = #tpu.dot_dimension_numbers<[1], [0], [0], [1], [0, 0, 1, 1], [], []>} : vector<2x18xbf16>, vector<18x256xbf16>, vector<2x256xf32> -> vector<2x256xf32>
    %c0_36 = arith.constant 0 : index
    %c0_37 = arith.constant 0 : index
    %89 = vector.load %arg3[%c0_36, %c0_37] : memref<16x2xbf16, #tpu.memory_space<vmem>>, vector<16x2xbf16>
    %90 = arith.truncf %88 : vector<2x256xf32> to vector<2x256xbf16>
    %cst_38 = arith.constant dense<0.000000e+00> : vector<16x256xf32>
    %91 = tpu.matmul %89, %90, %cst_38 {dimension_numbers = #tpu.dot_dimension_numbers<[1], [0], [0], [1], [0, 0, 1, 1], [], []>} : vector<16x2xbf16>, vector<2x256xbf16>, vector<16x256xf32> -> vector<16x256xf32>
    %c0_39 = arith.constant 0 : index
    %c0_40 = arith.constant 0 : index
    %92 = vector.load %arg4[%c0_39, %c0_40] : memref<16x6xbf16, #tpu.memory_space<vmem>>, vector<16x6xbf16>
    %cst_41 = arith.constant dense<0.000000e+00> : vector<16x256xf32>
    %93 = tpu.matmul %92, %4, %cst_41 {dimension_numbers = #tpu.dot_dimension_numbers<[1], [0], [0], [1], [0, 0, 1, 1], [], []>} : vector<16x6xbf16>, vector<6x256xbf16>, vector<16x256xf32> -> vector<16x256xf32>
    %94 = arith.addf %91, %93 : vector<16x256xf32>
    %c0_42 = arith.constant 0 : index
    %c0_43 = arith.constant 0 : index
    %95 = vector.load %arg5[%c0_42, %c0_43] : memref<16x1xf32, #tpu.memory_space<vmem>>, vector<16x1xf32>
    %96 = vector.broadcast %95 : vector<16x1xf32> to vector<16x256xf32>
    %97 = arith.addf %94, %96 : vector<16x256xf32>
    %cst_44 = arith.constant 0.000000e+00 : f32
    %98 = vector.broadcast %cst_44 : f32 to vector<16x256xf32>
    %99 = arith.maximumf %97, %98 : vector<16x256xf32>
    %c0_45 = arith.constant 0 : index
    %c0_46 = arith.constant 0 : index
    %100 = vector.load %arg6[%c0_45, %c0_46] : memref<8x16xbf16, #tpu.memory_space<vmem>>, vector<8x16xbf16>
    %101 = arith.truncf %99 : vector<16x256xf32> to vector<16x256xbf16>
    %cst_47 = arith.constant dense<0.000000e+00> : vector<8x256xf32>
    %102 = tpu.matmul %100, %101, %cst_47 {dimension_numbers = #tpu.dot_dimension_numbers<[1], [0], [0], [1], [0, 0, 1, 1], [], []>} : vector<8x16xbf16>, vector<16x256xbf16>, vector<8x256xf32> -> vector<8x256xf32>
    %103 = arith.addf %1, %102 : vector<8x256xf32>
    %104 = vector.shape_cast %103 : vector<8x256xf32> to vector<1x8x256xf32>
    %c0_48 = arith.constant 0 : index
    %c0_49 = arith.constant 0 : index
    %c0_50 = arith.constant 0 : index
    %105 = vector.load %arg7[%c0_48, %c0_49, %c0_50] : memref<1x8x256xf32, #tpu.memory_space<vmem>>, vector<1x8x256xf32>
    tpu.vector_store %arg7[%c0_48, %c0_49, %c0_50], %104 {strides = array<i32>} : memref<1x8x256xf32, #tpu.memory_space<vmem>>, vector<1x8x256xf32>,
    return
  }
  func.func @transform_0(%arg0: i32) -> (i32, i32, i32) {
    %c0_i32 = arith.constant 0 : i32
    %c0_i32_0 = arith.constant 0 : i32
    %c0_i32_1 = arith.constant 0 : i32
    return %arg0, %c0_i32, %c0_i32_0 : i32, i32, i32
  }
  func.func @transform_1(%arg0: i32) -> (i32, i32) {
    %c0_i32 = arith.constant 0 : i32
    %c0_i32_0 = arith.constant 0 : i32
    %c0_i32_1 = arith.constant 0 : i32
    return %c0_i32, %c0_i32_0 : i32, i32
  }
  func.func @transform_2(%arg0: i32) -> (i32, i32) {
    %c0_i32 = arith.constant 0 : i32
    %c0_i32_0 = arith.constant 0 : i32
    %c0_i32_1 = arith.constant 0 : i32
    return %c0_i32, %c0_i32_0 : i32, i32
  }
  func.func @transform_3(%arg0: i32) -> (i32, i32) {
    %c0_i32 = arith.constant 0 : i32
    %c0_i32_0 = arith.constant 0 : i32
    %c0_i32_1 = arith.constant 0 : i32
    return %c0_i32, %c0_i32_0 : i32, i32
  }
  func.func @transform_4(%arg0: i32) -> (i32, i32) {
    %c0_i32 = arith.constant 0 : i32
    %c0_i32_0 = arith.constant 0 : i32
    %c0_i32_1 = arith.constant 0 : i32
    return %c0_i32, %c0_i32_0 : i32, i32
  }
  func.func @transform_5(%arg0: i32) -> (i32, i32) {
    %c0_i32 = arith.constant 0 : i32
    %c0_i32_0 = arith.constant 0 : i32
    %c0_i32_1 = arith.constant 0 : i32
    return %c0_i32, %c0_i32_0 : i32, i32
  }
  func.func @transform_6(%arg0: i32) -> (i32, i32, i32) {
    %c0_i32 = arith.constant 0 : i32
    %c0_i32_0 = arith.constant 0 : i32
    %c0_i32_1 = arith.constant 0 : i32
    return %arg0, %c0_i32, %c0_i32_0 : i32, i32, i32
  }
}

</mosaic_0001>

<llo_original>
// kernel: fasternet_block.1
$region0: #{fasternet_block.1}
  #allocation0 [shape = 'u32[]', space=smem, size = 0x4, offset = 0x4, fixed_abs, tag = 'smem constant byte address 0x4 - core index']
  #allocation1 [shape = 'u32[144,128]{1,0:T(1,128)}', space=vmem, size = 0x12000, scoped, tag = 'internal scratch']
  #allocation2 [shape = 'f32[18,256]{1,0:T(8,128)}', space=vmem, size = 0x6000, scoped, tag = 'scratch operand']
  %s0 = inlined_call_operand.vmem [shape: f32[2,8,256], index: 0, kind: input, shape index: {}]
  %s1 = inlined_call_operand.vmem [shape: bf16[2,18], index: 1, kind: input, shape index: {}]
  %s2 = inlined_call_operand.vmem [shape: bf16[16,2], index: 2, kind: input, shape index: {}]
  %s3 = inlined_call_operand.vmem [shape: bf16[16,6], index: 3, kind: input, shape index: {}]
  %s4 = inlined_call_operand.vmem [shape: f32[16,1], index: 4, kind: input, shape index: {}]
  %s5 = inlined_call_operand.vmem [shape: bf16[8,16], index: 5, kind: input, shape index: {}]
  %s6 = inlined_call_operand.vmem [shape: f32[2,8,256], index: 6, kind: output, shape index: {}]
  %s7 = sld [smem:[#allocation0]]
  $region57: #{fasternet_block.1} parent=0
    _
  %s9 = ssub.s32 1, %s7
  %s10 = scalar_select 0, %s9, %s7
  loop: start=0, step=1, limit=4
  $region2: #{fasternet_block.1} parent=0 // loop_pre_header
    _
  $region3: #{fasternet_block.1} parent=0 // loop_header
    %s12 = sphi 0, %s16
    %p13 = scmp.ge.s32.totalorder %s12, 4
    %s22 = sphi 0, %s24
    %s25 = sphi 0, %s22
    %s26 = sphi 0, %s25
    %s42 = sphi 0, %s26
    %s46 = sphi 0, %s46
    %s48 = sphi 0, %s46
    %s49 = sphi 0, %s48
    %s63 = sphi 0, %s49
    %s67 = sphi 0, %s67
    %s69 = sphi 0, %s67
    %s70 = sphi 0, %s69
    %s84 = sphi 0, %s70
    %s88 = sphi 0, %s88
    %s90 = sphi 0, %s88
    %s91 = sphi 0, %s90
    %s105 = sphi 0, %s91
    %s109 = sphi 0, %s109
    %s111 = sphi 0, %s109
    %s112 = sphi 0, %s111
    %s126 = sphi 0, %s112
    %s130 = sphi 0, %s130
    %s132 = sphi 0, %s130
    %s133 = sphi 0, %s132
    %s147 = sphi 0, %s133
    %s153 = sphi 0, %s155
    %s156 = sphi 0, %s153
    %s157 = sphi 0, %s156
    %s173 = sphi 0, %s157
  $region4: #{fasternet_block.1} parent=0 // loop_header_branch
    %15 = sbr.rel (%p13) target = $region8
  $region5: #{fasternet_block.1} parent=0 // loop_body
    %s17 = ssub.s32 %s12, 1
    %s18 = ssub.s32 %s12, 2
    %s19 = sadd.s32 %s12, 1
    %s20 = ssub.s32 %s12, %s19
    %p21 = scmp.eq.s32.totalorder %s20, 0
    %s23 = sadd.s32 %s22, 1
    %s24 = scalar_select %p21, %s22, %s23
    %p27 = pneg %p21
    %p28 = scmp.eq.s32.totalorder %s12, 1
    %p29 = por %p27, %p28
    %p30 = scmp.ne.s32.totalorder %s22, %s25
    %p31 = scmp.eq.s32.totalorder %s12, 0
    %p32 = por %p30, %p31
    %p33 = scmp.ne.s32.totalorder %s22, %s25
    %p34 = scmp.eq.s32.totalorder %s17, 1
    %p35 = por %p33, %p34
    %p36 = scmp.ne.s32.totalorder %s25, %s26
    %p37 = scmp.eq.s32.totalorder %s17, 0
    %p38 = por %p36, %p37
    %p39 = scmp.ne.s32.totalorder %s25, %s26
    %p40 = scmp.eq.s32.totalorder %s18, 1
    %p41 = por %p39, %p40
    %p43 = scmp.ne.s32.totalorder %s26, %s42
    %p44 = scmp.eq.s32.totalorder %s18, 0
    %p45 = por %p43, %p44
    %s47 = sadd.s32 %s46, 1
    %p50 = scmp.eq.s32.totalorder %s12, 1
    %p51 = scmp.ne.s32.totalorder %s46, %s48
    %p52 = scmp.eq.s32.totalorder %s12, 0
    %p53 = por %p51, %p52
    %p54 = scmp.ne.s32.totalorder %s46, %s48
    %p55 = scmp.eq.s32.totalorder %s17, 1
    %p56 = por %p54, %p55
    %p57 = scmp.ne.s32.totalorder %s48, %s49
    %p58 = scmp.eq.s32.totalorder %s17, 0
    %p59 = por %p57, %p58
    %p60 = scmp.ne.s32.totalorder %s48, %s49
    %p61 = scmp.eq.s32.totalorder %s18, 1
    %p62 = por %p60, %p61
    %p64 = scmp.ne.s32.totalorder %s49, %s63
    %p65 = scmp.eq.s32.totalorder %s18, 0
    %p66 = por %p64, %p65
    %s68 = sadd.s32 %s67, 1
    %p71 = scmp.eq.s32.totalorder %s12, 1
    %p72 = scmp.ne.s32.totalorder %s67, %s69
    %p73 = scmp.eq.s32.totalorder %s12, 0
    %p74 = por %p72, %p73
    %p75 = scmp.ne.s32.totalorder %s67, %s69
    %p76 = scmp.eq.s32.totalorder %s17, 1
    %p77 = por %p75, %p76
    %p78 = scmp.ne.s32.totalorder %s69, %s70
    %p79 = scmp.eq.s32.totalorder %s17, 0
    %p80 = por %p78, %p79
    %p81 = scmp.ne.s32.totalorder %s69, %s70
    %p82 = scmp.eq.s32.totalorder %s18, 1
    %p83 = por %p81, %p82
    %p85 = scmp.ne.s32.totalorder %s70, %s84
    %p86 = scmp.eq.s32.totalorder %s18, 0
    %p87 = por %p85, %p86
    %s89 = sadd.s32 %s88, 1
    %p92 = scmp.eq.s32.totalorder %s12, 1
    %p93 = scmp.ne.s32.totalorder %s88, %s90
    %p94 = scmp.eq.s32.totalorder %s12, 0
    %p95 = por %p93, %p94
    %p96 = scmp.ne.s32.totalorder %s88, %s90
    %p97 = scmp.eq.s32.totalorder %s17, 1
    %p98 = por %p96, %p97
    %p99 = scmp.ne.s32.totalorder %s90, %s91
    %p100 = scmp.eq.s32.totalorder %s17, 0
    %p101 = por %p99, %p100
    %p102 = scmp.ne.s32.totalorder %s90, %s91
    %p103 = scmp.eq.s32.totalorder %s18, 1
    %p104 = por %p102, %p103
    %p106 = scmp.ne.s32.totalorder %s91, %s105
    %p107 = scmp.eq.s32.totalorder %s18, 0
    %p108 = por %p106, %p107
    %s110 = sadd.s32 %s109, 1
    %p113 = scmp.eq.s32.totalorder %s12, 1
    %p114 = scmp.ne.s32.totalorder %s109, %s111
    %p115 = scmp.eq.s32.totalorder %s12, 0
    %p116 = por %p114, %p115
    %p117 = scmp.ne.s32.totalorder %s109, %s111
    %p118 = scmp.eq.s32.totalorder %s17, 1
    %p119 = por %p117, %p118
    %p120 = scmp.ne.s32.totalorder %s111, %s112
    %p121 = scmp.eq.s32.totalorder %s17, 0
    %p122 = por %p120, %p121
    %p123 = scmp.ne.s32.totalorder %s111, %s112
    %p124 = scmp.eq.s32.totalorder %s18, 1
    %p125 = por %p123, %p124
    %p127 = scmp.ne.s32.totalorder %s112, %s126
    %p128 = scmp.eq.s32.totalorder %s18, 0
    %p129 = por %p127, %p128
    %s131 = sadd.s32 %s130, 1
    %p134 = scmp.eq.s32.totalorder %s12, 1
    %p135 = scmp.ne.s32.totalorder %s130, %s132
    %p136 = scmp.eq.s32.totalorder %s12, 0
    %p137 = por %p135, %p136
    %p138 = scmp.ne.s32.totalorder %s130, %s132
    %p139 = scmp.eq.s32.totalorder %s17, 1
    %p140 = por %p138, %p139
    %p141 = scmp.ne.s32.totalorder %s132, %s133
    %p142 = scmp.eq.s32.totalorder %s17, 0
    %p143 = por %p141, %p142
    %p144 = scmp.ne.s32.totalorder %s132, %s133
    %p145 = scmp.eq.s32.totalorder %s18, 1
    %p146 = por %p144, %p145
    %p148 = scmp.ne.s32.totalorder %s133, %s147
    %p149 = scmp.eq.s32.totalorder %s18, 0
    %p150 = por %p148, %p149
    %s151 = ssub.s32 %s12, %s19
    %p152 = scmp.eq.s32.totalorder %s151, 0
    %s154 = sadd.s32 %s153, 1
    %s155 = scalar_select %p152, %s153, %s154
    %p158 = pneg %p152
    %p159 = scmp.eq.s32.totalorder %s12, 1
    %p160 = por %p158, %p159
    %p161 = scmp.ne.s32.totalorder %s153, %s156
    %p162 = scmp.eq.s32.totalorder %s12, 0
    %p163 = por %p161, %p162
    %p164 = scmp.ne.s32.totalorder %s153, %s156
    %p165 = scmp.eq.s32.totalorder %s17, 1
    %p166 = por %p164, %p165
    %p167 = scmp.ne.s32.totalorder %s156, %s157
    %p168 = scmp.eq.s32.totalorder %s17, 0
    %p169 = por %p167, %p168
    %p170 = scmp.ne.s32.totalorder %s156, %s157
    %p171 = scmp.eq.s32.totalorder %s18, 1
    %p172 = por %p170, %p171
    %p174 = scmp.ne.s32.totalorder %s157, %s173
    %p175 = scmp.eq.s32.totalorder %s18, 0
    %p176 = por %p174, %p175
    %p177 = scmp.le.s32.totalorder 1, %s12
    %p178 = scmp.lt.s32.totalorder %s12, 3
    %p179 = pnand %p177, %p178
    %p180 = pneg %p179
    // Predicated region
    $region9: #{fasternet_block.1} parent=5 // pred_check
      _
    $region10: #{fasternet_block.1} parent=5 // pred_check_branch
      %182 = sbr.rel (%p179) target = $region12
    $region11: #{fasternet_block.1} parent=5 // pred_region
      %s183 = ssub.s32 %s12, 1
      // Predicated region
      $region13: #{fasternet_block.1} parent=11 // pred_check
        %p184 = pneg %p59
      $region14: #{fasternet_block.1} parent=11 // pred_check_branch
        %186 = sbr.rel (%p184) target = $region16
      $region15: #{fasternet_block.1} parent=11 // pred_region
        _
      $region16: #{fasternet_block.1} parent=11 // pred_fallthru
        _
      // Predicated region
      $region17: #{fasternet_block.1} parent=11 // pred_check
        %p187 = pneg %p80
      $region18: #{fasternet_block.1} parent=11 // pred_check_branch
        %189 = sbr.rel (%p187) target = $region20
      $region19: #{fasternet_block.1} parent=11 // pred_region
        _
      $region20: #{fasternet_block.1} parent=11 // pred_fallthru
        _
      // Predicated region
      $region21: #{fasternet_block.1} parent=11 // pred_check
        %p190 = pneg %p101
      $region22: #{fasternet_block.1} parent=11 // pred_check_branch
        %192 = sbr.rel (%p190) target = $region24
      $region23: #{fasternet_block.1} parent=11 // pred_region
        _
      $region24: #{fasternet_block.1} parent=11 // pred_fallthru
        _
      // Predicated region
      $region25: #{fasternet_block.1} parent=11 // pred_check
        %p193 = pneg %p122
      $region26: #{fasternet_block.1} parent=11 // pred_check_branch
        %195 = sbr.rel (%p193) target = $region28
      $region27: #{fasternet_block.1} parent=11 // pred_region
        _
      $region28: #{fasternet_block.1} parent=11 // pred_fallthru
        _
      // Predicated region
      $region29: #{fasternet_block.1} parent=11 // pred_check
        %p196 = pneg %p143
      $region30: #{fasternet_block.1} parent=11 // pred_check_branch
        %198 = sbr.rel (%p196) target = $region32
      $region31: #{fasternet_block.1} parent=11 // pred_region
        _
      $region32: #{fasternet_block.1} parent=11 // pred_fallthru
        _
    $region12: #{fasternet_block.1} parent=5 // pred_fallthru
      _
    %p199 = scmp.lt.s32.totalorder %s12, 2
    // Predicated region
    $region33: #{fasternet_block.1} parent=5 // pred_check
      %p200 = pneg %p199
    $region34: #{fasternet_block.1} parent=5 // pred_check_branch
      %202 = sbr.rel (%p200) target = $region36
    $region35: #{fasternet_block.1} parent=5 // pred_region
      // Predicated region
      $region37: #{fasternet_block.1} parent=35 // pred_check
        %p203 = pneg %p32
      $region38: #{fasternet_block.1} parent=35 // pred_check_branch
        %205 = sbr.rel (%p203) target = $region40
      $region39: #{fasternet_block.1} parent=35 // pred_region
        %p206 = scmp.lt.s32.totalorder %s12, 1
        %s207 = scalar_select %p206, %s12, 1
        %s208 = smul.addr %s207, 2
        %s209 = smul.addr %s208, 8
        %s210 = scalar_lea.vmem %s0, %s209
      $region40: #{fasternet_block.1} parent=35 // pred_fallthru
        _
    $region36: #{fasternet_block.1} parent=5 // pred_fallthru
      _
    %p211 = scmp.le.s32.totalorder 1, %s12
    %p212 = scmp.lt.s32.totalorder %s12, 3
    %p213 = pnand %p211, %p212
    %p214 = pneg %p213
    // Predicated region
    $region41: #{fasternet_block.1} parent=5 // pred_check
      _
    $region42: #{fasternet_block.1} parent=5 // pred_check_branch
      %216 = sbr.rel (%p213) target = $region44
    $region43: #{fasternet_block.1} parent=5 // pred_region
      %s217 = ssub.s32 %s12, 1
      %p218 = scmp.lt.s32.totalorder %s17, 1
      %s219 = scalar_select %p218, %s17, 1
      %s220 = smul.addr %s219, 2
      %s221 = smul.addr %s220, 8
      %s222 = scalar_lea.vmem %s0, %s221
      %p223 = pneg %p38
      %p224 = pneg %p35
      %p225 = pneg %p59
      %p226 = pneg %p56
      %p227 = pneg %p80
      %p228 = pneg %p77
      %p229 = pneg %p101
      %p230 = pneg %p98
      %p231 = pneg %p122
      %p232 = pneg %p119
      %p233 = pneg %p143
      %p234 = pneg %p140
      %p235 = pneg %p169
      %p236 = pneg %p166
      %p237 = scmp.lt.s32.totalorder %s17, 1
      %s238 = scalar_select %p237, %s17, 1
      %s239 = smul.addr %s238, 2
      %s240 = smul.addr %s239, 8
      %s241 = scalar_lea.vmem %s6, %s240
      %p242 = scmp.lt.s32.totalorder %s17, 1
      %s243 = scalar_select %p242, %s17, 1
      %s244 = smul.addr %s243, 2
      %s245 = smul.addr %s244, 8
      %s246 = scalar_lea.vmem %s0, %s245
      %p247 = scmp.lt.s32.totalorder %s17, 1
      %s248 = scalar_select %p247, %s17, 1
      %s249 = smul.addr %s248, 2
      %s250 = smul.addr %s249, 8
      %s251 = scalar_lea.vmem %s6, %s250
      %v253 = vld [vmem:[%s246] sm:$0xff]
      %v254 = vld [vmem:[%s246 + $0x8] sm:$0xff]
      %v255 = vpack.c.bf16 %v253, %v253
      %v256 = vpack.c.bf16 %v254, %v254
      %v257 = vlaneseq
      %v258 = vand.u32 %v257, 127
      %v259 = vadd.s32 %v258, 128
      %v260 = vand.u32 %v258, 15
      %v261 = vand.u32 %v259, 15
      %262 = vrot.lane.b32.xlu0 %v253, 17
      %v263 = vpop.permute.xlu0 %262
      %264 = vrot.lane.b32.xlu0 %v254, 17
      %v265 = vpop.permute.xlu0 %264
      %vm266 = vcmp.lt.s32.totalorder %v258, 17
      %v267 = vsel %vm266, %v263, %v265
      %v268 = vsel %vm266, %v265, %v263
      %vm269 = vcmp.ge.s32.totalorder %v258, 16
      %vm270 = vcmp.ge.s32.totalorder %v259, 16
      %vm271 = vcmp.ne.s32.totalorder %v260, 0
      %vm272 = vcmp.ne.s32.totalorder %v261, 0
      %vm273 = vmand %vm269, %vm271
      %vm274 = vmand %vm270, %vm272
      %v275 = vsel %vm273, 1, 0
      %v276 = vsel %vm274, 1, 0
      %vm277 = vcmp.eq.s32.totalorder %v275, 1
      %vm278 = vcmp.eq.s32.totalorder %v276, 1
      %v279 = vsel %vm277, %v268, 0.0
      %v280 = vsel %vm278, %v267, 0.0
      %281 = vst [vmem:[#allocation2] sm:$0x3] %v279
      %282 = vst [vmem:[#allocation2 + $0x8] sm:$0x3] %v280
      %283 = vrot.lane.b32.xlu0 %v253, 16
      %v284 = vpop.permute.xlu0 %283
      %285 = vrot.lane.b32.xlu0 %v254, 16
      %v286 = vpop.permute.xlu0 %285
      %vm287 = vcmp.lt.s32.totalorder %v258, 16
      %v288 = vsel %vm287, %v284, %v286
      %v289 = vsel %vm287, %v286, %v284
      %v290 = vsel %vm269, 1, 0
      %v291 = vsel %vm270, 1, 0
      %vm292 = vcmp.eq.s32.totalorder %v290, 1
      %vm293 = vcmp.eq.s32.totalorder %v291, 1
      %v294 = vsel %vm292, %v289, 0.0
      %v295 = vsel %vm293, %v288, 0.0
      %v298 = vrot.slane %v294, 6
      %v299 = vrot.slane %v295, 6
      %302 = vst [vmem:[#allocation2] sm:$0xc] %v298
      %303 = vst [vmem:[#allocation2 + $0x8] sm:$0xc] %v299
      %304 = vrot.lane.b32.xlu0 %v253, 15
      %v305 = vpop.permute.xlu0 %304
      %306 = vrot.lane.b32.xlu0 %v254, 15
      %v307 = vpop.permute.xlu0 %306
      %vm308 = vcmp.lt.s32.totalorder %v258, 15
      %v309 = vsel %vm308, %v305, %v307
      %v310 = vsel %vm308, %v307, %v305
      %vm311 = vcmp.ne.s32.totalorder %v260, 15
      %vm312 = vcmp.ne.s32.totalorder %v261, 15
      %vm313 = vmand %vm269, %vm311
      %vm314 = vmand %vm270, %vm312
      %v315 = vsel %vm313, 1, 0
      %v316 = vsel %vm314, 1, 0
      %vm317 = vcmp.eq.s32.totalorder %v315, 1
      %vm318 = vcmp.eq.s32.totalorder %v316, 1
      %v319 = vsel %vm317, %v310, 0.0
      %v320 = vsel %vm318, %v309, 0.0
      %v323 = vrot.slane %v319, 4
      %v324 = vrot.slane %v320, 4
      %327 = vst [vmem:[#allocation2] sm:$0x30] %v323
      %328 = vst [vmem:[#allocation2 + $0x8] sm:$0x30] %v324
      %329 = vrot.lane.b32.xlu0 %v253, 1
      %v330 = vpop.permute.xlu0 %329
      %331 = vrot.lane.b32.xlu0 %v254, 1
      %v332 = vpop.permute.xlu0 %331
      %vm333 = vcmp.lt.s32.totalorder %v258, 1
      %v334 = vsel %vm333, %v330, %v332
      %v335 = vsel %vm333, %v332, %v330
      %v336 = vsel %vm271, 1, 0
      %v337 = vsel %vm272, 1, 0
      %vm338 = vcmp.eq.s32.totalorder %v336, 1
      %vm339 = vcmp.eq.s32.totalorder %v337, 1
      %v340 = vsel %vm338, %v335, 0.0
      %v341 = vsel %vm339, %v334, 0.0
      %v344 = vrot.slane %v340, 2
      %v345 = vrot.slane %v341, 2
      %348 = vst [vmem:[#allocation2] sm:$0xc0] %v344
      %349 = vst [vmem:[#allocation2 + $0x8] sm:$0xc0] %v345
      %350 = vst [vmem:[#allocation2 + $0x10] sm:$0x3] %v253
      %351 = vst [vmem:[#allocation2 + $0x18] sm:$0x3] %v254
      %352 = vrot.lane.b32.xlu0 %v253, 127
      %v353 = vpop.permute.xlu0 %352
      %354 = vrot.lane.b32.xlu0 %v254, 127
      %v355 = vpop.permute.xlu0 %354
      %vm356 = vcmp.lt.s32.totalorder %v258, 127
      %v357 = vsel %vm356, %v353, %v355
      %v358 = vsel %vm356, %v355, %v353
      %v359 = vsel %vm311, 1, 0
      %v360 = vsel %vm312, 1, 0
      %vm361 = vcmp.eq.s32.totalorder %v359, 1
      %vm362 = vcmp.eq.s32.totalorder %v360, 1
      %v363 = vsel %vm361, %v357, 0.0
      %v364 = vsel %vm362, %v358, 0.0
      %v367 = vrot.slane %v363, 6
      %v368 = vrot.slane %v364, 6
      %371 = vst [vmem:[#allocation2 + $0x10] sm:$0xc] %v367
      %372 = vst [vmem:[#allocation2 + $0x18] sm:$0xc] %v368
      %373 = vrot.lane.b32.xlu0 %v253, 113
      %v374 = vpop.permute.xlu0 %373
      %375 = vrot.lane.b32.xlu0 %v254, 113
      %v376 = vpop.permute.xlu0 %375
      %vm377 = vcmp.lt.s32.totalorder %v258, 113
      %v378 = vsel %vm377, %v374, %v376
      %v379 = vsel %vm377, %v376, %v374
      %vm380 = vcmp.lt.s32.totalorder %v258, 240
      %vm381 = vcmp.lt.s32.totalorder %v259, 240
      %vm382 = vmand %vm380, %vm271
      %vm383 = vmand %vm381, %vm272
      %v384 = vsel %vm382, 1, 0
      %v385 = vsel %vm383, 1, 0
      %vm386 = vcmp.eq.s32.totalorder %v384, 1
      %vm387 = vcmp.eq.s32.totalorder %v385, 1
      %v388 = vsel %vm386, %v378, 0.0
      %v389 = vsel %vm387, %v379, 0.0
      %v392 = vrot.slane %v388, 4
      %v393 = vrot.slane %v389, 4
      %396 = vst [vmem:[#allocation2 + $0x10] sm:$0x30] %v392
      %397 = vst [vmem:[#allocation2 + $0x18] sm:$0x30] %v393
      %398 = vrot.lane.b32.xlu0 %v253, 112
      %v399 = vpop.permute.xlu0 %398
      %400 = vrot.lane.b32.xlu0 %v254, 112
      %v401 = vpop.permute.xlu0 %400
      %vm402 = vcmp.lt.s32.totalorder %v258, 112
      %v403 = vsel %vm402, %v399, %v401
      %v404 = vsel %vm402, %v401, %v399
      %v405 = vsel %vm380, 1, 0
      %v406 = vsel %vm381, 1, 0
      %vm407 = vcmp.eq.s32.totalorder %v405, 1
      %vm408 = vcmp.eq.s32.totalorder %v406, 1
      %v409 = vsel %vm407, %v403, 0.0
      %v410 = vsel %vm408, %v404, 0.0
      %v413 = vrot.slane %v409, 2
      %v414 = vrot.slane %v410, 2
      %417 = vst [vmem:[#allocation2 + $0x10] sm:$0xc0] %v413
      %418 = vst [vmem:[#allocation2 + $0x18] sm:$0xc0] %v414
      %419 = vrot.lane.b32.xlu0 %v253, 111
      %v420 = vpop.permute.xlu0 %419
      %421 = vrot.lane.b32.xlu0 %v254, 111
      %v422 = vpop.permute.xlu0 %421
      %vm423 = vcmp.lt.s32.totalorder %v258, 111
      %v424 = vsel %vm423, %v420, %v422
      %v425 = vsel %vm423, %v422, %v420
      %vm426 = vmand %vm380, %vm311
      %vm427 = vmand %vm381, %vm312
      %v428 = vsel %vm426, 1, 0
      %v429 = vsel %vm427, 1, 0
      %vm430 = vcmp.eq.s32.totalorder %v428, 1
      %vm431 = vcmp.eq.s32.totalorder %v429, 1
      %v432 = vsel %vm430, %v424, 0.0
      %v433 = vsel %vm431, %v425, 0.0
      %434 = vst [vmem:[#allocation2 + $0x20] sm:$0x3] %v432
      %435 = vst [vmem:[#allocation2 + $0x28] sm:$0x3] %v433
      %v436 = vld [vmem:[#allocation2] sm:$0xff]
      %v437 = vld [vmem:[#allocation2 + $0x8] sm:$0xff]
      %v438 = vld [vmem:[#allocation2 + $0x10] sm:$0xff]
      %v439 = vld [vmem:[#allocation2 + $0x18] sm:$0xff]
      %v440 = vld [vmem:[#allocation2 + $0x20] sm:$0x3]
      %v441 = vld [vmem:[#allocation2 + $0x28] sm:$0x3]
      %v442 = vpack.c.bf16 %v438, %v436
      %v443 = vpack.c.bf16 %v439, %v437
      %v444 = vpack.c.bf16 %v440, %v440
      %v445 = vpack.c.bf16 %v441, %v441
      %v446 = vld [vmem:[%s1] sm:$0x1]
      %vm447 = vcmask 146432
      %v449 = vsel %vm447, %v446, 0
      %vm451 = vcmask 1040384
      %v453 = vsel %vm451, %v444, 0
      %v456 = vsel %vm451, %v445, 0
      %458 = vmatprep.subr.bf16.mxu0 %v443
      %459 = vmatpush1.bf16.msra.mxu0 %v442
      %460 = vmatprep.subr.bf16.mxu0 %v456
      %461 = vmatpush1.bf16.msra.mxu0 %v453
      %462 = vmatprep.subr.bf16.mxu0 0
      %463 = vmatpush1.bf16.msra.mxu0 0
      %464 = vmatprep.subr.bf16.mxu0 0
      %465 = vmatpush1.bf16.msra.mxu0 0
      %466 = vmatprep.subr.bf16.mxu0 0
      %467 = vmatpush1.bf16.msra.mxu0 0
      %468 = vmatprep.subr.bf16.mxu0 0
      %469 = vmatpush1.bf16.msra.mxu0 0
      %470 = vmatprep.subr.bf16.mxu0 0
      %471 = vmatpush1.bf16.msra.mxu0 0
      %472 = vmatprep.subr.bf16.mxu0 0
      %473 = vmatpush1.bf16.msra.mxu0 0
      %474 = vmatprep.subr.bf16.mxu0 0
      %475 = vmatpush1.bf16.msra.mxu0 0
      %476 = vmatprep.subr.bf16.mxu0 0
      %477 = vmatpush1.bf16.msra.mxu0 0
      %478 = vmatprep.subr.bf16.mxu0 0
      %479 = vmatpush1.bf16.msra.mxu0 0
      %480 = vmatprep.subr.bf16.mxu0 0
      %481 = vmatpush1.bf16.msra.mxu0 0
      %482 = vmatprep.subr.bf16.mxu0 0
      %483 = vmatpush1.bf16.msra.mxu0 0
      %484 = vmatprep.subr.bf16.mxu0 0
      %485 = vmatpush1.bf16.msra.mxu0 0
      %486 = vmatprep.subr.bf16.mxu0 0
      %487 = vmatpush1.bf16.msra.mxu0 0
      %488 = vmatprep.subr.bf16.mxu0 0
      %489 = vmatpush1.bf16.msra.mxu0 0
      %490 = vmatprep.mubr.bf16.mxu0 0
      %491 = vmatmul.mubr.bf16.gmra.mrb[0].mxu0 %v449
      %v492 = vpop.f32.mrb[0].mxu0
      %v493 = vadd.f32 0.0, %v492
      %v494 = vpop.f32.mrb[0].mxu0
      %v495 = vadd.f32 0.0, %v494
      %v496 = vpop.f32.mrb[0].mxu0
      %v497 = vpop.f32.mrb[0].mxu0
      %498 = vdwg.mxu0
      %v499 = vld [vmem:[%s2] sm:$0xf]
      %v500 = vld [vmem:[%s2 + $0x4] sm:$0xf]
      %v501 = vpack.c.bf16 %v493, %v493
      %v502 = vpack.c.bf16 %v495, %v495
      %v503 = vld [vmem:[%s3] sm:$0xf]
      %v504 = vld [vmem:[%s3 + $0x4] sm:$0xf]
      %v507 = vunpack.c.l.b16 %v503
      %v508 = vunpack.c.l.b16 %v504
      %v509 = vpack.c.b16 %v508, %v507
      %v512 = vrot.slane %v255, 1
      %v513 = vrot.slane %v256, 1
      %vm514 = vcmask 48128
      %v516 = vsel %vm514, %v509, 0
      %vm518 = vcmask 1042432
      %v520 = vsel %vm518, %v512, 0
      %v523 = vsel %vm518, %v513, 0
      %525 = vmatprep.subr.bf16.mxu0 %v523
      %526 = vmatpush1.bf16.msra.mxu0 %v520
      %527 = vmatprep.subr.bf16.mxu0 0
      %528 = vmatpush1.bf16.msra.mxu0 0
      %529 = vmatprep.subr.bf16.mxu0 0
      %530 = vmatpush1.bf16.msra.mxu0 0
      %531 = vmatprep.subr.bf16.mxu0 0
      %532 = vmatpush1.bf16.msra.mxu0 0
      %533 = vmatprep.subr.bf16.mxu0 0
      %534 = vmatpush1.bf16.msra.mxu0 0
      %535 = vmatprep.subr.bf16.mxu0 0
      %536 = vmatpush1.bf16.msra.mxu0 0
      %537 = vmatprep.subr.bf16.mxu0 0
      %538 = vmatpush1.bf16.msra.mxu0 0
      %539 = vmatprep.subr.bf16.mxu0 0
      %540 = vmatpush1.bf16.msra.mxu0 0
      %541 = vmatprep.subr.bf16.mxu0 0
      %542 = vmatpush1.bf16.msra.mxu0 0
      %543 = vmatprep.subr.bf16.mxu0 0
      %544 = vmatpush1.bf16.msra.mxu0 0
      %545 = vmatprep.subr.bf16.mxu0 0
      %546 = vmatpush1.bf16.msra.mxu0 0
      %547 = vmatprep.subr.bf16.mxu0 0
      %548 = vmatpush1.bf16.msra.mxu0 0
      %549 = vmatprep.subr.bf16.mxu0 0
      %550 = vmatpush1.bf16.msra.mxu0 0
      %551 = vmatprep.subr.bf16.mxu0 0
      %552 = vmatpush1.bf16.msra.mxu0 0
      %553 = vmatprep.subr.bf16.mxu0 0
      %554 = vmatpush1.bf16.msra.mxu0 0
      %555 = vmatprep.subr.bf16.mxu0 0
      %556 = vmatpush1.bf16.msra.mxu0 0
      %557 = vmatprep.mubr.bf16.mxu0 0
      %558 = vmatmul.mubr.bf16.gmra.mrb[0].mxu0 %v516
      %v559 = vpop.f32.mrb[0].mxu0
      %v560 = vadd.f32 0.0, %v559
      %v561 = vpop.f32.mrb[0].mxu0
      %v562 = vadd.f32 0.0, %v561
      %v563 = vpop.f32.mrb[0].mxu0
      %v564 = vadd.f32 0.0, %v563
      %v565 = vpop.f32.mrb[0].mxu0
      %v566 = vadd.f32 0.0, %v565
      %567 = vdwg.mxu0
      %v570 = vunpack.c.l.b16 %v499
      %v571 = vunpack.c.l.b16 %v500
      %v572 = vpack.c.b16 %v571, %v570
      %vm573 = vcmask 15360
      %v575 = vsel %vm573, %v572, 0
      %v578 = vsel %vm451, %v501, 0
      %v581 = vsel %vm451, %v502, 0
      %583 = vmatprep.subr.bf16.mxu0 %v581
      %584 = vmatpush1.bf16.msra.mxu0 %v578
      %585 = vmatprep.subr.bf16.mxu0 0
      %586 = vmatpush1.bf16.msra.mxu0 0
      %587 = vmatprep.subr.bf16.mxu0 0
      %588 = vmatpush1.bf16.msra.mxu0 0
      %589 = vmatprep.subr.bf16.mxu0 0
      %590 = vmatpush1.bf16.msra.mxu0 0
      %591 = vmatprep.subr.bf16.mxu0 0
      %592 = vmatpush1.bf16.msra.mxu0 0
      %593 = vmatprep.subr.bf16.mxu0 0
      %594 = vmatpush1.bf16.msra.mxu0 0
      %595 = vmatprep.subr.bf16.mxu0 0
      %596 = vmatpush1.bf16.msra.mxu0 0
      %597 = vmatprep.subr.bf16.mxu0 0
      %598 = vmatpush1.bf16.msra.mxu0 0
      %599 = vmatprep.subr.bf16.mxu0 0
      %600 = vmatpush1.bf16.msra.mxu0 0
      %601 = vmatprep.subr.bf16.mxu0 0
      %602 = vmatpush1.bf16.msra.mxu0 0
      %603 = vmatprep.subr.bf16.mxu0 0
      %604 = vmatpush1.bf16.msra.mxu0 0
      %605 = vmatprep.subr.bf16.mxu0 0
      %606 = vmatpush1.bf16.msra.mxu0 0
      %607 = vmatprep.subr.bf16.mxu0 0
      %608 = vmatpush1.bf16.msra.mxu0 0
      %609 = vmatprep.subr.bf16.mxu0 0
      %610 = vmatpush1.bf16.msra.mxu0 0
      %611 = vmatprep.subr.bf16.mxu0 0
      %612 = vmatpush1.bf16.msra.mxu0 0
      %613 = vmatprep.subr.bf16.mxu0 0
      %614 = vmatpush1.bf16.msra.mxu0 0
      %615 = vmatprep.mubr.bf16.mxu0 0
      %616 = vmatmul.mubr.bf16.gmra.mrb[0].mxu0 %v575
      %v617 = vpop.f32.mrb[0].mxu0
      %v618 = vadd.f32 %v560, %v617
      %v619 = vpop.f32.mrb[0].mxu0
      %v620 = vadd.f32 %v562, %v619
      %v621 = vpop.f32.mrb[0].mxu0
      %v622 = vadd.f32 %v564, %v621
      %v623 = vpop.f32.mrb[0].mxu0
      %v624 = vadd.f32 %v566, %v623
      %625 = vdwg.mxu0
      %v626 = vld [vmem:[%s4] sm:$0xff]
      %v627 = vld [vmem:[%s4 + $0x8] sm:$0xff]
      %629 = vset.pattern.permute.xlu0 0
      %630 = vperm.xlu0 %629, %v626
      %v631 = vpop.permute.xlu0 %630
      %634 = vset.pattern.permute.xlu0 0
      %635 = vperm.xlu0 %634, %v627
      %v636 = vpop.permute.xlu0 %635
      %v638 = vadd.f32 %v618, %v631
      %v639 = vadd.f32 %v620, %v631
      %v640 = vadd.f32 %v622, %v636
      %v641 = vadd.f32 %v624, %v636
      %v642 = vmax.f32 %v638, 0.0
      %v643 = vmax.f32 %v639, 0.0
      %v644 = vmax.f32 %v640, 0.0
      %v645 = vmax.f32 %v641, 0.0
      %v646 = vld [vmem:[%s5] sm:$0xf]
      %v647 = vpack.c.bf16 %v644, %v642
      %v648 = vpack.c.bf16 %v645, %v643
      %vm649 = vcmask 130048
      %v651 = vsel %vm649, %v646, 0
      %653 = vmatprep.subr.bf16.mxu0 %v648
      %654 = vmatpush1.bf16.msra.mxu0 %v647
      %655 = vmatprep.subr.bf16.mxu0 0
      %656 = vmatpush1.bf16.msra.mxu0 0
      %657 = vmatprep.subr.bf16.mxu0 0
      %658 = vmatpush1.bf16.msra.mxu0 0
      %659 = vmatprep.subr.bf16.mxu0 0
      %660 = vmatpush1.bf16.msra.mxu0 0
      %661 = vmatprep.subr.bf16.mxu0 0
      %662 = vmatpush1.bf16.msra.mxu0 0
      %663 = vmatprep.subr.bf16.mxu0 0
      %664 = vmatpush1.bf16.msra.mxu0 0
      %665 = vmatprep.subr.bf16.mxu0 0
      %666 = vmatpush1.bf16.msra.mxu0 0
      %667 = vmatprep.subr.bf16.mxu0 0
      %668 = vmatpush1.bf16.msra.mxu0 0
      %669 = vmatprep.subr.bf16.mxu0 0
      %670 = vmatpush1.bf16.msra.mxu0 0
      %671 = vmatprep.subr.bf16.mxu0 0
      %672 = vmatpush1.bf16.msra.mxu0 0
      %673 = vmatprep.subr.bf16.mxu0 0
      %674 = vmatpush1.bf16.msra.mxu0 0
      %675 = vmatprep.subr.bf16.mxu0 0
      %676 = vmatpush1.bf16.msra.mxu0 0
      %677 = vmatprep.subr.bf16.mxu0 0
      %678 = vmatpush1.bf16.msra.mxu0 0
      %679 = vmatprep.subr.bf16.mxu0 0
      %680 = vmatpush1.bf16.msra.mxu0 0
      %681 = vmatprep.subr.bf16.mxu0 0
      %682 = vmatpush1.bf16.msra.mxu0 0
      %683 = vmatprep.subr.bf16.mxu0 0
      %684 = vmatpush1.bf16.msra.mxu0 0
      %685 = vmatprep.mubr.bf16.mxu0 0
      %686 = vmatmul.mubr.bf16.gmra.mrb[0].mxu0 %v651
      %v687 = vpop.f32.mrb[0].mxu0
      %v688 = vadd.f32 0.0, %v687
      %v689 = vpop.f32.mrb[0].mxu0
      %v690 = vadd.f32 0.0, %v689
      %v691 = vpop.f32.mrb[0].mxu0
      %v692 = vpop.f32.mrb[0].mxu0
      %693 = vdwg.mxu0
      %v694 = vadd.f32 %v253, %v688
      %v695 = vadd.f32 %v254, %v690
      %696 = vst [vmem:[%s251] sm:$0xff] %v694
      %697 = vst [vmem:[%s251 + $0x8] sm:$0xff] %v695
      %p698 = scmp.lt.s32.totalorder %s17, 1
      %s699 = scalar_select %p698, %s17, 1
      %s700 = smul.addr %s699, 2
      %s701 = smul.addr %s700, 8
      %s702 = scalar_lea.vmem %s6, %s701
      // Predicated region
      $region45: #{fasternet_block.1} parent=43 // pred_check
        %p703 = pneg %p166
      $region46: #{fasternet_block.1} parent=43 // pred_check_branch
        %705 = sbr.rel (%p703) target = $region48
      $region47: #{fasternet_block.1} parent=43 // pred_region
        _
      $region48: #{fasternet_block.1} parent=43 // pred_fallthru
        _
    $region44: #{fasternet_block.1} parent=5 // pred_fallthru
      _
    %p706 = scmp.le.s32.totalorder 2, %s12
    // Predicated region
    $region49: #{fasternet_block.1} parent=5 // pred_check
      %p707 = pneg %p706
    $region50: #{fasternet_block.1} parent=5 // pred_check_branch
      %709 = sbr.rel (%p707) target = $region52
    $region51: #{fasternet_block.1} parent=5 // pred_region
      %s710 = ssub.s32 %s12, 2
      // Predicated region
      $region53: #{fasternet_block.1} parent=51 // pred_check
        %p711 = pneg %p172
      $region54: #{fasternet_block.1} parent=51 // pred_check_branch
        %713 = sbr.rel (%p711) target = $region56
      $region55: #{fasternet_block.1} parent=51 // pred_region
        %p714 = scmp.lt.s32.totalorder %s18, 1
        %s715 = scalar_select %p714, %s18, 1
        %s716 = smul.addr %s715, 2
        %s717 = smul.addr %s716, 8
        %s718 = scalar_lea.vmem %s6, %s717
      $region56: #{fasternet_block.1} parent=51 // pred_fallthru
        _
    $region52: #{fasternet_block.1} parent=5 // pred_fallthru
      _
  $region6: #{fasternet_block.1} parent=0 // loop_footer
    %s16 = sadd.s32 1, %s12
  $region7: #{fasternet_block.1} parent=0 // loop_footer_branch
    %11 = sbr.rel target = $region3
  $region8: #{fasternet_block.1} parent=0 // loop_exit
    _

</llo_original>
